<compile_context>
chip_gen: v7x
topology: tpu7x:2x2x1
jax: 0.10.0
libtpu: 0.0.40
codegen_flags: <defaults>
</compile_context>

<pallas_src>
import functools
from typing import NamedTuple

import jax
import jax.numpy as jnp
from jax.experimental import pallas as pl
from jax.experimental.pallas import tpu as pltpu


def _round_up(x, m):
    return (x + m - 1) // m * m


def _pad_feature(d, cdt):
    # bf16 K/N dims aligned to 256 when already large (full 256x256 MXU
    # passes on v6e/v7x); otherwise lane-dense multiples of 128.
    if jnp.dtype(cdt) == jnp.bfloat16 and d >= 256:
        return _round_up(d, 256)
    return _round_up(d, 128)


class MLPParams(NamedTuple):
    w1t: jax.Array   # (in_p, hid_p)  compute dtype, pre-transposed + padded
    b1r: jax.Array   # (1, hid_p)     float32
    w2t: jax.Array   # (hid_p, out_p) compute dtype, pre-transposed + padded
    b2r: jax.Array   # (1, out_p)     float32


def prepare_params(w1, b1, w2, b2, *, compute_dtype=None):
    """One-time layout plumbing for PyTorch-style Linear weights.

    w1: (hidden, in), w2: (out, hidden).  Returns (params, dims) where dims is
    the static (in_features, hidden, out_features) tuple for the forward.
    """
    cdt = jnp.dtype(compute_dtype) if compute_dtype is not None else jnp.dtype(w1.dtype)
    hidden, in_features = w1.shape
    out_features = w2.shape[0]
    in_p = _pad_feature(in_features, cdt)
    hid_p = _pad_feature(hidden, cdt)
    out_p = _pad_feature(out_features, cdt)

    w1t = jnp.pad(w1.T.astype(cdt),
                  ((0, in_p - in_features), (0, hid_p - hidden)))
    w2t = jnp.pad(w2.T.astype(cdt),
                  ((0, hid_p - hidden), (0, out_p - out_features)))
    b1r = jnp.pad(b1.astype(jnp.float32)[None, :],
                  ((0, 0), (0, hid_p - hidden)))
    b2r = jnp.pad(b2.astype(jnp.float32)[None, :],
                  ((0, 0), (0, out_p - out_features)))
    return MLPParams(w1t, b1r, w2t, b2r), (in_features, hidden, out_features)


def mlp_kernel(x_ref, w1_ref, b1_ref, w2_ref, b2_ref, o_ref, h_ref):
    # fc1 (+bias+ReLU) only on the first output tile of each batch tile; the
    # intermediate lives in an explicitly budgeted VMEM scratch (compute
    # dtype), so per-out-tile steps re-use it with no recompute / re-cast.
    @pl.when(pl.program_id(1) == 0)
    def _():
        h = jnp.dot(x_ref[...], w1_ref[...], preferred_element_type=jnp.float32)
        h_ref[...] = jnp.maximum(h + b1_ref[...], 0.0).astype(h_ref.dtype)

    # fc2 on the current output tile; MXU accumulation stays f32.
    y = jnp.dot(h_ref[...], w2_ref[...], preferred_element_type=jnp.float32)
    o_ref[...] = (y + b2_ref[...]).astype(o_ref.dtype)


def _vmem_capacity_bytes():
    try:
        cap = getattr(pltpu.get_tpu_info(), "vmem_capacity_bytes", None)
        if cap:
            return int(cap)
    except Exception:
        pass
    return 64 << 20  # conservative fallback (v7x per-core VMEM)


def _vmem_estimate(bm, in_p, hid_p, tn, nj, isz, osz):
    w2_buf = 1 if nj == 1 else 2
    return (2 * bm * in_p * isz            # x tile (double-buffered)
            + 2 * bm * tn * osz            # out tile (double-buffered)
            + in_p * hid_p * isz           # w1 (single buffer, grid-invariant)
            + hid_p * 4                    # b1 (single buffer)
            + w2_buf * hid_p * tn * isz    # w2
            + w2_buf * tn * 4              # b2
            + bm * hid_p * isz)            # fc1 intermediate scratch


def _spec(shape, index_map, mode=None):
    if mode is None:
        return pl.BlockSpec(shape, index_map)
    return pl.BlockSpec(shape, index_map, pipeline_mode=mode)


@functools.partial(jax.jit,
                   static_argnames=("dims", "block_m", "allow_xla_fallback"))
def mlp_forward(x, params, dims, block_m=256, allow_xla_fallback=True):
    """y = relu(x @ w1.T + b1) @ w2.T + b2  (PyTorch nn.Linear semantics)."""
    in_features, hidden, out_features = dims
    batch = x.shape[0]
    out_dtype = x.dtype
    cdt = params.w1t.dtype
    isz = jnp.dtype(cdt).itemsize
    osz = jnp.dtype(out_dtype).itemsize

    in_p, hid_p = params.w1t.shape
    out_p = params.w2t.shape[1]

    # Tiny problems: padding to 128 lanes makes most MXU work zeros and the
    # per-step pipeline overhead dominates -- let XLA handle it.
    if (allow_xla_fallback and batch <= 8 and in_p <= 128 and hid_p <= 128
            and out_p <= 128):
        xq = jnp.pad(x, ((0, 0), (0, in_p - in_features))).astype(cdt)
        h = jnp.maximum(
            jnp.dot(xq, params.w1t, preferred_element_type=jnp.float32)
            + params.b1r, 0.0)
        y = jnp.dot(h.astype(cdt), params.w2t,
                    preferred_element_type=jnp.float32) + params.b2r
        return y[:, :out_features].astype(out_dtype)

    # Batch tile: split into >=2 tiles whenever possible so the 'parallel'
    # batch axis can shard across v7x's two TensorCores.  16-row alignment for
    # bf16 (sublane packing), 8 for f32.
    align_m = 16 if jnp.dtype(cdt) == jnp.bfloat16 else 8
    if batch <= align_m:
        bm = align_m
    elif batch <= 2 * block_m:
        bm = _round_up(-(-batch // 2), align_m)
    else:
        bm = _round_up(block_m, align_m)
    bm = max(align_m, min(bm, _round_up(block_m, align_m)))
    batch_p = _round_up(batch, bm)
    n_bt = batch_p // bm

    # Output tiling: keep fc2 weights fully resident when they fit the
    # generation-aware VMEM budget, otherwise tile out_p with the largest
    # 128-multiple divisor that fits.
    budget = _vmem_capacity_bytes() * 7 // 8   # ~112 MiB v5e/v6e, ~56 MiB v7x
    tn = out_p
    nj = 1
    if _vmem_estimate(bm, in_p, hid_p, tn, 1, isz, osz) > budget:
        q = out_p // 128
        tn = 128
        for d in range(q, 0, -1):
            if q % d:
                continue
            cand = d * 128
            if _vmem_estimate(bm, in_p, hid_p, cand, out_p // cand,
                              isz, osz) <= budget:
                tn = cand
                break
        nj = out_p // tn
    # TODO(synk): for hidden/in dims too large even at tn=128 (v7x 64 MiB),
    # add a reduction grid axis over hid_p with a pl.when-initialized f32
    # accumulator.

    # Per-call activation plumbing only (weights already prepared).
    xp = jnp.pad(x.astype(cdt),
                 ((0, batch_p - batch), (0, in_p - in_features)))

    est = _vmem_estimate(bm, in_p, hid_p, tn, nj, isz, osz)
    vmem_limit = int(min(max(est * 5 // 4 + (2 << 20), 16 << 20), budget))

    flops = 2 * batch_p * (in_p * hid_p + hid_p * out_p)
    bytes_accessed = (xp.size * isz
                      + params.w1t.size * isz + params.b1r.size * 4
                      + (params.w2t.size * isz + params.b2r.size * 4)
                      * (n_bt if nj > 1 else 1)
                      + batch_p * out_p * osz)

    inv = pl.Buffered(1)                 # grid-invariant blocks: single buffer
    w2_mode = inv if nj == 1 else None   # default double-buffer when tiled

    out_padded = pl.pallas_call(
        mlp_kernel,
        out_shape=jax.ShapeDtypeStruct((batch_p, out_p), out_dtype),
        grid_spec=pltpu.PrefetchScalarGridSpec(
            num_scalar_prefetch=0,
            grid=(n_bt, nj),
            in_specs=[
                # Batch tile of the (padded, cast) input.
                _spec((bm, in_p), lambda i, j: (i, 0)),
                # Grid-invariant fc1 weight/bias: fetched once, single buffer.
                _spec((in_p, hid_p), lambda i, j: (0, 0), inv),
                _spec((1, hid_p), lambda i, j: (0, 0), inv),
                # fc2 weight/bias: per-out-tile column blocks.
                _spec((hid_p, tn), lambda i, j: (0, j), w2_mode),
                _spec((1, tn), lambda i, j: (0, j), w2_mode),
            ],
            out_specs=pl.BlockSpec((bm, tn), lambda i, j: (i, j)),
            scratch_shapes=[pltpu.VMEM((bm, hid_p), cdt)],
        ),
        compiler_params=pltpu.CompilerParams(
            dimension_semantics=("parallel", "arbitrary"),
            vmem_limit_bytes=vmem_limit),
        cost_estimate=pl.CostEstimate(
            flops=flops, transcendentals=0, bytes_accessed=bytes_accessed),
    )(xp, params.w1t, params.b1r, params.w2t, params.b2r)

    # Slice away batch / lane padding.
    return out_padded[:batch, :out_features]


def init_linear_params(key, in_features, out_features, dtype=jnp.float32):
    """PyTorch nn.Linear default init: U(-1/sqrt(fan_in), 1/sqrt(fan_in))."""
    kw, kb = jax.random.split(key)
    bound = 1.0 / (in_features ** 0.5)
    w = jax.random.uniform(kw, (out_features, in_features), dtype,
                           minval=-bound, maxval=bound)
    b = jax.random.uniform(kb, (out_features,), dtype,
                           minval=-bound, maxval=bound)
    return w, b


def mlp_reference(x, w1, b1, w2, b2):
    hp = jax.lax.Precision.HIGHEST
    h = jnp.maximum(jnp.dot(x, w1.T, precision=hp) + b1, 0.0)
    return jnp.dot(h, w2.T, precision=hp) + b2


if __name__ == "__main__":
    key = jax.random.PRNGKey(0)
    k_x, k_fc1, k_fc2, k_x2, k_tf1, k_tf2 = jax.random.split(key, 6)

    # Main case: NN(input_size=128, hidden_size=256, output_size=128), batch=64
    # (small, but large enough to exercise the Pallas path + 2-tile batch grid).
    input_size, hidden_size, output_size = 128, 256, 128
    batch = 64

    x = jax.random.normal(k_x, (batch, input_size), jnp.float32)
    w1, b1 = init_linear_params(k_fc1, input_size, hidden_size)
    w2, b2 = init_linear_params(k_fc2, hidden_size, output_size)
    ref = mlp_reference(x, w1, b1, w2, b2)

    # f32 operand path.
    params_f32, dims = prepare_params(w1, b1, w2, b2)
    out = jax.block_until_ready(mlp_forward(x, params_f32, dims))
    assert out.shape == (batch, output_size)
    assert jnp.allclose(out, ref, atol=2e-3, rtol=2e-3)

    # bf16 operand path (f32 accumulation) -- valid on v5e/v6e/v7x.
    params_bf16, _ = prepare_params(w1, b1, w2, b2, compute_dtype=jnp.bfloat16)
    out_bf16 = jax.block_until_ready(mlp_forward(x, params_bf16, dims))
    assert out_bf16.shape == (batch, output_size)
    assert jnp.allclose(out_bf16, ref, atol=5e-2, rtol=5e-2)

    # Tiny case (NN(32, 64, 16), batch=8): check both the XLA fallback and the
    # forced-Pallas padded path.
    ti, th, to, tb = 32, 64, 16, 8
    x2 = jax.random.normal(k_x2, (tb, ti), jnp.float32)
    tw1, tb1 = init_linear_params(k_tf1, ti, th)
    tw2, tb2 = init_linear_params(k_tf2, th, to)
    ref2 = mlp_reference(x2, tw1, tb1, tw2, tb2)
    tparams, tdims = prepare_params(tw1, tb1, tw2, tb2)
    out2a = jax.block_until_ready(mlp_forward(x2, tparams, tdims))  # XLA path
    out2b = jax.block_until_ready(
        mlp_forward(x2, tparams, tdims, allow_xla_fallback=False))  # Pallas
    assert jnp.allclose(out2a, ref2, atol=2e-3, rtol=2e-3)
    assert jnp.allclose(out2b, ref2, atol=2e-3, rtol=2e-3)

    print("KERNEL_OK")
</pallas_src>

<mosaic_0001>
module attributes {stable_mosaic.version = 11 : i64} {
  func.func @mlp_kernel(%arg0: i32, %arg1: i32, %arg2: memref<32x128xf32, #tpu.memory_space<vmem>>, %arg3: memref<128x256xf32, #tpu.memory_space<vmem>>, %arg4: memref<1x256xf32, #tpu.memory_space<vmem>>, %arg5: memref<256x128xf32, #tpu.memory_space<vmem>>, %arg6: memref<1x128xf32, #tpu.memory_space<vmem>>, %arg7: memref<32x128xf32, #tpu.memory_space<vmem>>, %arg8: memref<32x256xf32, #tpu.memory_space<vmem>>) attributes {dimension_semantics = [#tpu.dimension_semantics<parallel>, #tpu.dimension_semantics<arbitrary>], iteration_bounds = array<i64: 2, 1>, scalar_prefetch = 0 : i64, scratch_operands = 1 : i64, tpu.core_type = #tpu.core_type<tc>, window_params = [{transform_indices = @transform_0, window_bounds = array<i64: 32, 128>}, {pipeline_mode = #tpu.pipeline_mode<synchronous>, transform_indices = @transform_1, window_bounds = array<i64: 128, 256>}, {pipeline_mode = #tpu.pipeline_mode<synchronous>, transform_indices = @transform_2, window_bounds = array<i64: 1, 256>}, {pipeline_mode = #tpu.pipeline_mode<synchronous>, transform_indices = @transform_3, window_bounds = array<i64: 256, 128>}, {pipeline_mode = #tpu.pipeline_mode<synchronous>, transform_indices = @transform_4, window_bounds = array<i64: 1, 128>}, {transform_indices = @transform_5, window_bounds = array<i64: 32, 128>}]} {
    %c0_i32 = arith.constant 0 : i32
    %0 = arith.cmpi eq, %arg1, %c0_i32 : i32
    %1 = arith.extui %0 : i1 to i32
    %c0_i32_0 = arith.constant 0 : i32
    %2 = arith.cmpi ne, %1, %c0_i32_0 : i32
    scf.if %2 {
      %c0_8 = arith.constant 0 : index
      %c0_9 = arith.constant 0 : index
      %10 = vector.load %arg2[%c0_8, %c0_9] : memref<32x128xf32, #tpu.memory_space<vmem>>, vector<32x128xf32>
      %c0_10 = arith.constant 0 : index
      %c0_11 = arith.constant 0 : index
      %11 = vector.load %arg3[%c0_10, %c0_11] : memref<128x256xf32, #tpu.memory_space<vmem>>, vector<128x256xf32>
      %cst_12 = arith.constant dense<0.000000e+00> : vector<32x256xf32>
      %12 = tpu.matmul %10, %11, %cst_12 {dimension_numbers = #tpu.dot_dimension_numbers<[1], [0], [0], [1], [0, 0, 1, 1], [], []>} : vector<32x128xf32>, vector<128x256xf32>, vector<32x256xf32> -> vector<32x256xf32>
      %c0_13 = arith.constant 0 : index
      %c0_14 = arith.constant 0 : index
      %13 = vector.load %arg4[%c0_13, %c0_14] : memref<1x256xf32, #tpu.memory_space<vmem>>, vector<1x256xf32>
      %14 = vector.broadcast %13 : vector<1x256xf32> to vector<32x256xf32>
      %15 = arith.addf %12, %14 : vector<32x256xf32>
      %cst_15 = arith.constant 0.000000e+00 : f32
      %16 = vector.broadcast %cst_15 : f32 to vector<32x256xf32>
      %17 = arith.maximumf %15, %16 : vector<32x256xf32>
      %c0_16 = arith.constant 0 : index
      %c0_17 = arith.constant 0 : index
      %18 = vector.load %arg8[%c0_16, %c0_17] : memref<32x256xf32, #tpu.memory_space<vmem>>, vector<32x256xf32>
      tpu.vector_store %arg8[%c0_16, %c0_17], %17 {strides = array<i32>} : memref<32x256xf32, #tpu.memory_space<vmem>>, vector<32x256xf32>,
    } else {
    }
    %c0 = arith.constant 0 : index
    %c0_1 = arith.constant 0 : index
    %3 = vector.load %arg8[%c0, %c0_1] : memref<32x256xf32, #tpu.memory_space<vmem>>, vector<32x256xf32>
    %c0_2 = arith.constant 0 : index
    %c0_3 = arith.constant 0 : index
    %4 = vector.load %arg5[%c0_2, %c0_3] : memref<256x128xf32, #tpu.memory_space<vmem>>, vector<256x128xf32>
    %cst = arith.constant dense<0.000000e+00> : vector<32x128xf32>
    %5 = tpu.matmul %3, %4, %cst {dimension_numbers = #tpu.dot_dimension_numbers<[1], [0], [0], [1], [0, 0, 1, 1], [], []>} : vector<32x256xf32>, vector<256x128xf32>, vector<32x128xf32> -> vector<32x128xf32>
    %c0_4 = arith.constant 0 : index
    %c0_5 = arith.constant 0 : index
    %6 = vector.load %arg6[%c0_4, %c0_5] : memref<1x128xf32, #tpu.memory_space<vmem>>, vector<1x128xf32>
    %7 = vector.broadcast %6 : vector<1x128xf32> to vector<32x128xf32>
    %8 = arith.addf %5, %7 : vector<32x128xf32>
    %c0_6 = arith.constant 0 : index
    %c0_7 = arith.constant 0 : index
    %9 = vector.load %arg7[%c0_6, %c0_7] : memref<32x128xf32, #tpu.memory_space<vmem>>, vector<32x128xf32>
    tpu.vector_store %arg7[%c0_6, %c0_7], %8 {strides = array<i32>} : memref<32x128xf32, #tpu.memory_space<vmem>>, vector<32x128xf32>,
    return
  }
  func.func @transform_0(%arg0: i32, %arg1: i32) -> (i32, i32) {
    %c0_i32 = arith.constant 0 : i32
    %c0_i32_0 = arith.constant 0 : i32
    return %arg0, %c0_i32 : i32, i32
  }
  func.func @transform_1(%arg0: i32, %arg1: i32) -> (i32, i32) {
    %c0_i32 = arith.constant 0 : i32
    %c0_i32_0 = arith.constant 0 : i32
    %c0_i32_1 = arith.constant 0 : i32
    return %c0_i32, %c0_i32_0 : i32, i32
  }
  func.func @transform_2(%arg0: i32, %arg1: i32) -> (i32, i32) {
    %c0_i32 = arith.constant 0 : i32
    %c0_i32_0 = arith.constant 0 : i32
    %c0_i32_1 = arith.constant 0 : i32
    return %c0_i32, %c0_i32_0 : i32, i32
  }
  func.func @transform_3(%arg0: i32, %arg1: i32) -> (i32, i32) {
    %c0_i32 = arith.constant 0 : i32
    %c0_i32_0 = arith.constant 0 : i32
    return %c0_i32, %arg1 : i32, i32
  }
  func.func @transform_4(%arg0: i32, %arg1: i32) -> (i32, i32) {
    %c0_i32 = arith.constant 0 : i32
    %c0_i32_0 = arith.constant 0 : i32
    return %c0_i32, %arg1 : i32, i32
  }
  func.func @transform_5(%arg0: i32, %arg1: i32) -> (i32, i32) {
    %c0_i32 = arith.constant 0 : i32
    return %arg0, %arg1 : i32, i32
  }
}

</mosaic_0001>

<llo_original>
// kernel: mlp_forward.1
$region0: #{mlp_forward.1}
  #allocation0 [shape = 'u32[]', space=smem, size = 0x4, offset = 0x4, fixed_abs, tag = 'smem constant byte address 0x4 - core index']
  #allocation1 [shape = 'u32[144,128]{1,0:T(1,128)}', space=vmem, size = 0x12000, scoped, tag = 'internal scratch']
  #allocation2 [shape = 'f32[32,256]{1,0:T(8,128)}', space=vmem, size = 0x8000, scoped, tag = 'scratch operand']
  %s0 = inlined_call_operand.hbm [shape: f32[64,128], index: 0, kind: input, shape index: {}]
  %s1 = inlined_call_operand.hbm [shape: f32[128,256], index: 1, kind: input, shape index: {}]
  %s2 = inlined_call_operand.vmem [shape: f32[1,256], index: 2, kind: input, shape index: {}]
  %s3 = inlined_call_operand.hbm [shape: f32[256,128], index: 3, kind: input, shape index: {}]
  %s4 = inlined_call_operand.vmem [shape: f32[1,128], index: 4, kind: input, shape index: {}]
  %s5 = inlined_call_operand.hbm [shape: f32[64,128], index: 5, kind: output, shape index: {}]
  %s6 = sld [smem:[#allocation0]]
  $region69: #{mlp_forward.1} parent=0
    _
  %s8 = ssub.s32 1, %s6
  %s9 = scalar_select 0, %s8, %s6
  $region1: #{mlp_forward.1} parent=0
    #allocation3 [shape = 'u8[32768]{0}', space=vmem, size = 0x8000, scoped, tag = 'input window, operand 0']
    #allocation4 [shape = 's32[2]{0}', space=sflag, size = 0x8, scoped, tag = 'scoped memory for mlp_forward.1']
    #allocation5 [shape = 's32[2]{0}', space=sflag, size = 0x8, scoped, tag = 'scoped memory for mlp_forward.1']
    #allocation6 [shape = 'u8[131072]{0}', space=vmem, size = 0x20000, scoped, tag = 'input window, operand 1, single buffered']
    #allocation7 [shape = 's32[1]{0}', space=sflag, size = 0x4, scoped, tag = 'scoped memory for mlp_forward.1']
    #allocation8 [shape = 'u8[131072]{0}', space=vmem, size = 0x20000, scoped, tag = 'input window, operand 3, single buffered']
    #allocation9 [shape = 'u8[32768]{0}', space=vmem, size = 0x8000, scoped, tag = 'output window, operand 0']
    %10 = vsyncpa [#allocation4], 0
    %s11 = scalar_lea.sflag [#allocation4], 1
    %12 = vsyncpa %s11, 0
    %13 = vsyncpa [#allocation7], 0
    %14 = vsyncpa [#allocation5], 0
    %s15 = scalar_lea.sflag [#allocation5], 1
    %16 = vsyncpa %s15, 0
    loop: start=0, step=1, limit=4
    $region2: #{mlp_forward.1} parent=1 // loop_pre_header
      _
    $region3: #{mlp_forward.1} parent=1 // loop_header
      %s18 = sphi 0, %s22
      %p19 = scmp.ge.s32.totalorder %s18, 4
      %s25 = sphi 0, %s37
      %s26 = sphi 0, %s33
      %s27 = sphi 0, %s25
      %s28 = sphi 0, %s26
      %s29 = sphi 0, %s27
      %s30 = sphi 0, %s28
      %s40 = sphi 0, %s42
      %s43 = sphi 0, %s40
      %s44 = sphi 0, %s43
      %s60 = sphi 0, %s44
      %s64 = sphi 0, %s64
      %s66 = sphi 0, %s64
      %s67 = sphi 0, %s66
      %s81 = sphi 0, %s67
      %s85 = sphi 0, %s85
      %s87 = sphi 0, %s85
      %s88 = sphi 0, %s87
      %s102 = sphi 0, %s88
      %s108 = sphi 0, %s110
      %s111 = sphi 0, %s108
      %s112 = sphi 0, %s111
      %s128 = sphi 0, %s112
      %s134 = sphi 0, %s136
      %s137 = sphi 0, %s134
      %s138 = sphi 0, %s137
      %s154 = sphi 0, %s138
      %s162 = sphi 0, %s164
      %s165 = sphi 0, %s162
      %s166 = sphi 0, %s165
      %s182 = sphi 0, %s166
    $region4: #{mlp_forward.1} parent=1 // loop_header_branch
      %21 = sbr.rel (%p19) target = $region8
    $region5: #{mlp_forward.1} parent=1 // loop_body
      %s23 = ssub.s32 %s18, 1
      %s24 = ssub.s32 %s18, 2
      %s31 = sadd.s32 1, %s26
      %p32 = scmp.ge.s32.totalorder %s31, 1
      %s33 = scalar_select %p32, 0, %s31
      %s34 = sadd.s32 1, %s25
      %s35 = scalar_select %p32, %s34, %s25
      %p36 = scmp.ge.s32.totalorder %s35, 2
      %s37 = scalar_select %p36, 0, %s35
      %s38 = ssub.s32 %s25, %s37
      %p39 = scmp.eq.s32.totalorder %s38, 0
      %s41 = sadd.s32 %s40, 1
      %s42 = scalar_select %p39, %s40, %s41
      %p45 = pneg %p39
      %p46 = scmp.eq.s32.totalorder %s18, 1
      %p47 = por %p45, %p46
      %p48 = scmp.ne.s32.totalorder %s40, %s43
      %p49 = scmp.eq.s32.totalorder %s18, 0
      %p50 = por %p48, %p49
      %p51 = scmp.ne.s32.totalorder %s40, %s43
      %p52 = scmp.eq.s32.totalorder %s23, 1
      %p53 = por %p51, %p52
      %p54 = scmp.ne.s32.totalorder %s43, %s44
      %p55 = scmp.eq.s32.totalorder %s23, 0
      %p56 = por %p54, %p55
      %p57 = scmp.ne.s32.totalorder %s43, %s44
      %p58 = scmp.eq.s32.totalorder %s24, 1
      %p59 = por %p57, %p58
      %p61 = scmp.ne.s32.totalorder %s44, %s60
      %p62 = scmp.eq.s32.totalorder %s24, 0
      %p63 = por %p61, %p62
      %s65 = sadd.s32 %s64, 1
      %p68 = scmp.eq.s32.totalorder %s18, 1
      %p69 = scmp.ne.s32.totalorder %s64, %s66
      %p70 = scmp.eq.s32.totalorder %s18, 0
      %p71 = por %p69, %p70
      %p72 = scmp.ne.s32.totalorder %s64, %s66
      %p73 = scmp.eq.s32.totalorder %s23, 1
      %p74 = por %p72, %p73
      %p75 = scmp.ne.s32.totalorder %s66, %s67
      %p76 = scmp.eq.s32.totalorder %s23, 0
      %p77 = por %p75, %p76
      %p78 = scmp.ne.s32.totalorder %s66, %s67
      %p79 = scmp.eq.s32.totalorder %s24, 1
      %p80 = por %p78, %p79
      %p82 = scmp.ne.s32.totalorder %s67, %s81
      %p83 = scmp.eq.s32.totalorder %s24, 0
      %p84 = por %p82, %p83
      %s86 = sadd.s32 %s85, 1
      %p89 = scmp.eq.s32.totalorder %s18, 1
      %p90 = scmp.ne.s32.totalorder %s85, %s87
      %p91 = scmp.eq.s32.totalorder %s18, 0
      %p92 = por %p90, %p91
      %p93 = scmp.ne.s32.totalorder %s85, %s87
      %p94 = scmp.eq.s32.totalorder %s23, 1
      %p95 = por %p93, %p94
      %p96 = scmp.ne.s32.totalorder %s87, %s88
      %p97 = scmp.eq.s32.totalorder %s23, 0
      %p98 = por %p96, %p97
      %p99 = scmp.ne.s32.totalorder %s87, %s88
      %p100 = scmp.eq.s32.totalorder %s24, 1
      %p101 = por %p99, %p100
      %p103 = scmp.ne.s32.totalorder %s88, %s102
      %p104 = scmp.eq.s32.totalorder %s24, 0
      %p105 = por %p103, %p104
      %s106 = ssub.s32 %s26, %s33
      %p107 = scmp.eq.s32.totalorder %s106, 0
      %s109 = sadd.s32 %s108, 1
      %s110 = scalar_select %p107, %s108, %s109
      %p113 = pneg %p107
      %p114 = scmp.eq.s32.totalorder %s18, 1
      %p115 = por %p113, %p114
      %p116 = scmp.ne.s32.totalorder %s108, %s111
      %p117 = scmp.eq.s32.totalorder %s18, 0
      %p118 = por %p116, %p117
      %p119 = scmp.ne.s32.totalorder %s108, %s111
      %p120 = scmp.eq.s32.totalorder %s23, 1
      %p121 = por %p119, %p120
      %p122 = scmp.ne.s32.totalorder %s111, %s112
      %p123 = scmp.eq.s32.totalorder %s23, 0
      %p124 = por %p122, %p123
      %p125 = scmp.ne.s32.totalorder %s111, %s112
      %p126 = scmp.eq.s32.totalorder %s24, 1
      %p127 = por %p125, %p126
      %p129 = scmp.ne.s32.totalorder %s112, %s128
      %p130 = scmp.eq.s32.totalorder %s24, 0
      %p131 = por %p129, %p130
      %s132 = ssub.s32 %s26, %s33
      %p133 = scmp.eq.s32.totalorder %s132, 0
      %s135 = sadd.s32 %s134, 1
      %s136 = scalar_select %p133, %s134, %s135
      %p139 = pneg %p133
      %p140 = scmp.eq.s32.totalorder %s18, 1
      %p141 = por %p139, %p140
      %p142 = scmp.ne.s32.totalorder %s134, %s137
      %p143 = scmp.eq.s32.totalorder %s18, 0
      %p144 = por %p142, %p143
      %p145 = scmp.ne.s32.totalorder %s134, %s137
      %p146 = scmp.eq.s32.totalorder %s23, 1
      %p147 = por %p145, %p146
      %p148 = scmp.ne.s32.totalorder %s137, %s138
      %p149 = scmp.eq.s32.totalorder %s23, 0
      %p150 = por %p148, %p149
      %p151 = scmp.ne.s32.totalorder %s137, %s138
      %p152 = scmp.eq.s32.totalorder %s24, 1
      %p153 = por %p151, %p152
      %p155 = scmp.ne.s32.totalorder %s138, %s154
      %p156 = scmp.eq.s32.totalorder %s24, 0
      %p157 = por %p155, %p156
      %s158 = ssub.s32 %s25, %s37
      %s159 = ssub.s32 %s26, %s33
      %s160 = sor.u32 %s158, %s159
      %p161 = scmp.eq.s32.totalorder %s160, 0
      %s163 = sadd.s32 %s162, 1
      %s164 = scalar_select %p161, %s162, %s163
      %p167 = pneg %p161
      %p168 = scmp.eq.s32.totalorder %s18, 1
      %p169 = por %p167, %p168
      %p170 = scmp.ne.s32.totalorder %s162, %s165
      %p171 = scmp.eq.s32.totalorder %s18, 0
      %p172 = por %p170, %p171
      %p173 = scmp.ne.s32.totalorder %s162, %s165
      %p174 = scmp.eq.s32.totalorder %s23, 1
      %p175 = por %p173, %p174
      %p176 = scmp.ne.s32.totalorder %s165, %s166
      %p177 = scmp.eq.s32.totalorder %s23, 0
      %p178 = por %p176, %p177
      %p179 = scmp.ne.s32.totalorder %s165, %s166
      %p180 = scmp.eq.s32.totalorder %s24, 1
      %p181 = por %p179, %p180
      %p183 = scmp.ne.s32.totalorder %s166, %s182
      %p184 = scmp.eq.s32.totalorder %s24, 0
      %p185 = por %p183, %p184
      %p186 = scmp.le.s32.totalorder 1, %s18
      %p187 = scmp.lt.s32.totalorder %s18, 3
      %p188 = pnand %p186, %p187
      %p189 = pneg %p188
      // Predicated region
      $region9: #{mlp_forward.1} parent=5 // pred_check
        _
      $region10: #{mlp_forward.1} parent=5 // pred_check_branch
        %191 = sbr.rel (%p188) target = $region12
      $region11: #{mlp_forward.1} parent=5 // pred_region
        %s192 = ssub.s32 %s18, 1
        // Predicated region
        $region13: #{mlp_forward.1} parent=11 // pred_check
          %p193 = pneg %p77
        $region14: #{mlp_forward.1} parent=11 // pred_check_branch
          %195 = sbr.rel (%p193) target = $region16
        $region15: #{mlp_forward.1} parent=11 // pred_region
          %s197 = ssub.s32 4096, 4096
          %198 = vsyncadd [#allocation7], %s197
          %s199 = sshll.u32 [#allocation6], 4
          %s200 = int_to_ptr.vmem [resolvable:$true] %s199
          %205 = dma.hbm_to_vmem [thread:$0]  %s1, 4096, %s200, [#allocation7], 256, 256, 16
        $region16: #{mlp_forward.1} parent=11 // pred_fallthru
          _
        // Predicated region
        $region17: #{mlp_forward.1} parent=11 // pred_check
          %p206 = pneg %p98
        $region18: #{mlp_forward.1} parent=11 // pred_check_branch
          %208 = sbr.rel (%p206) target = $region20
        $region19: #{mlp_forward.1} parent=11 // pred_region
          _
        $region20: #{mlp_forward.1} parent=11 // pred_fallthru
          _
        // Predicated region
        $region21: #{mlp_forward.1} parent=11 // pred_check
          %p209 = pneg %p124
        $region22: #{mlp_forward.1} parent=11 // pred_check_branch
          %211 = sbr.rel (%p209) target = $region24
        $region23: #{mlp_forward.1} parent=11 // pred_region
          %s213 = ssub.s32 4096, 4096
          %214 = vsyncadd [#allocation7], %s213
          %s215 = smul.addr %s28, 128
          %s216 = scalar_lea.hbm %s3, %s215
          %s217 = sshll.u32 [#allocation8], 4
          %s218 = int_to_ptr.vmem [resolvable:$true] %s217
          %223 = dma.hbm_to_vmem [thread:$0]  %s216, 4096, %s218, [#allocation7], 128, 128, 8
        $region24: #{mlp_forward.1} parent=11 // pred_fallthru
          _
        // Predicated region
        $region25: #{mlp_forward.1} parent=11 // pred_check
          %p224 = pneg %p150
        $region26: #{mlp_forward.1} parent=11 // pred_check_branch
          %226 = sbr.rel (%p224) target = $region28
        $region27: #{mlp_forward.1} parent=11 // pred_region
          %p227 = scmp.lt.s32.totalorder %s28, 0
          %s228 = scalar_select %p227, %s28, 0
          %s229 = scalar_lea.vmem %s4, %s228
        $region28: #{mlp_forward.1} parent=11 // pred_fallthru
          _
      $region12: #{mlp_forward.1} parent=5 // pred_fallthru
        _
      %p230 = scmp.lt.s32.totalorder %s18, 2
      // Predicated region
      $region29: #{mlp_forward.1} parent=5 // pred_check
        %p231 = pneg %p230
      $region30: #{mlp_forward.1} parent=5 // pred_check_branch
        %233 = sbr.rel (%p231) target = $region32
      $region31: #{mlp_forward.1} parent=5 // pred_region
        // Predicated region
        $region33: #{mlp_forward.1} parent=31 // pred_check
          %p234 = pneg %p50
        $region34: #{mlp_forward.1} parent=31 // pred_check_branch
          %236 = sbr.rel (%p234) target = $region36
        $region35: #{mlp_forward.1} parent=31 // pred_region
          %s237 = sand.u32 %s40, 1
          %s238 = scalar_lea.sflag [#allocation4], %s237
          %s239 = sand.u32 %s40, 1
          %s240 = smul.addr %s239, 32
          %s241 = scalar_lea.vmem [#allocation3], %s240
          %s242 = smul.u32 4, %s25
          %s244 = ssub.s32 512, 512
          %245 = vsyncadd %s238, %s244
          %s246 = smul.addr %s242, 128
          %s247 = scalar_lea.hbm %s0, %s246
          %s248 = sshll.u32 %s241, 4
          %s249 = int_to_ptr.vmem [resolvable:$true] %s248
          %254 = dma.hbm_to_vmem [thread:$0]  %s247, 512, %s249, %s238, 128, 128, 8
        $region36: #{mlp_forward.1} parent=31 // pred_fallthru
          _
      $region32: #{mlp_forward.1} parent=5 // pred_fallthru
        _
      %p255 = scmp.le.s32.totalorder 1, %s18
      %p256 = scmp.lt.s32.totalorder %s18, 3
      %p257 = pnand %p255, %p256
      %p258 = pneg %p257
      // Predicated region
      $region37: #{mlp_forward.1} parent=5 // pred_check
        _
      $region38: #{mlp_forward.1} parent=5 // pred_check_branch
        %260 = sbr.rel (%p257) target = $region40
      $region39: #{mlp_forward.1} parent=5 // pred_region
        %s261 = ssub.s32 %s18, 1
        %s262 = sand.u32 %s43, 1
        %s263 = scalar_lea.sflag [#allocation4], %s262
        %s264 = sand.u32 %s43, 1
        %s265 = smul.addr %s264, 32
        %s266 = scalar_lea.vmem [#allocation3], %s265
        // Predicated region
        $region41: #{mlp_forward.1} parent=39 // pred_check
          %p267 = pneg %p56
        $region42: #{mlp_forward.1} parent=39 // pred_check_branch
          %269 = sbr.rel (%p267) target = $region44
        $region43: #{mlp_forward.1} parent=39 // pred_region
          %270 = dma.done %s263, 512
        $region44: #{mlp_forward.1} parent=39 // pred_fallthru
          _
        // Predicated region
        $region45: #{mlp_forward.1} parent=39 // pred_check
          %p271 = pneg %p77
        $region46: #{mlp_forward.1} parent=39 // pred_check_branch
          %273 = sbr.rel (%p271) target = $region48
        $region47: #{mlp_forward.1} parent=39 // pred_region
          %274 = dma.done [#allocation7], 4096
        $region48: #{mlp_forward.1} parent=39 // pred_fallthru
          _
        // Predicated region
        $region49: #{mlp_forward.1} parent=39 // pred_check
          %p275 = pneg %p124
        $region50: #{mlp_forward.1} parent=39 // pred_check_branch
          %277 = sbr.rel (%p275) target = $region52
        $region51: #{mlp_forward.1} parent=39 // pred_region
          %278 = dma.done [#allocation7], 4096
        $region52: #{mlp_forward.1} parent=39 // pred_fallthru
          _
        %s279 = sand.u32 %s43, 1
        %s280 = scalar_lea.sflag [#allocation4], %s279
        %s281 = sand.u32 %s43, 1
        %s282 = smul.addr %s281, 32
        %s283 = scalar_lea.vmem [#allocation3], %s282
        %p284 = pneg %p56
        %p285 = pneg %p53
        %p286 = pneg %p77
        %p287 = pneg %p74
        %p288 = pneg %p98
        %p289 = pneg %p95
        %p290 = pneg %p124
        %p291 = pneg %p121
        %p292 = scmp.lt.s32.totalorder %s28, 0
        %s293 = scalar_select %p292, %s28, 0
        %s294 = scalar_lea.vmem %s4, %s293
        %p295 = pneg %p150
        %p296 = pneg %p147
        %p297 = pneg %p178
        %p298 = pneg %p175
        %s299 = sand.u32 %s165, 1
        %s300 = scalar_lea.sflag [#allocation5], %s299
        %s301 = sand.u32 %s165, 1
        %s302 = smul.addr %s301, 32
        %s303 = scalar_lea.vmem [#allocation9], %s302
        %s304 = smul.u32 4, %s27
        %p305 = scmp.lt.s32.totalorder %s28, 0
        %s306 = scalar_select %p305, %s28, 0
        %s307 = scalar_lea.vmem %s4, %s306
        %s308 = smul.u32 4, %s27
        %p309 = scmp.eq.s32.totalorder %s28, 0
        // Predicated region
        $region53: #{mlp_forward.1} parent=39 // pred_check
          %p310 = pneg %p309
        $region54: #{mlp_forward.1} parent=39 // pred_check_branch
          %312 = sbr.rel (%p310) target = $region56
        $region55: #{mlp_forward.1} parent=39 // pred_region
          %v313 = vld [vmem:[%s266] sm:$0xff]
          %v314 = vld [vmem:[%s266 + $0x8] sm:$0xff]
          %v315 = vld [vmem:[%s266 + $0x10] sm:$0xff]
          %v316 = vld [vmem:[%s266 + $0x18] sm:$0xff]
          %v317 = vld [vmem:[#allocation6] sm:$0xff]
          %v318 = vld [vmem:[#allocation6 + $0x8] sm:$0xff]
          %v319 = vld [vmem:[#allocation6 + $0x10] sm:$0xff]
          %v320 = vld [vmem:[#allocation6 + $0x18] sm:$0xff]
          %v321 = vld [vmem:[#allocation6 + $0x20] sm:$0xff]
          %v322 = vld [vmem:[#allocation6 + $0x28] sm:$0xff]
          %v323 = vld [vmem:[#allocation6 + $0x30] sm:$0xff]
          %v324 = vld [vmem:[#allocation6 + $0x38] sm:$0xff]
          %v325 = vld [vmem:[#allocation6 + $0x40] sm:$0xff]
          %v326 = vld [vmem:[#allocation6 + $0x48] sm:$0xff]
          %v327 = vld [vmem:[#allocation6 + $0x50] sm:$0xff]
          %v328 = vld [vmem:[#allocation6 + $0x58] sm:$0xff]
          %v329 = vld [vmem:[#allocation6 + $0x60] sm:$0xff]
          %v330 = vld [vmem:[#allocation6 + $0x68] sm:$0xff]
          %v331 = vld [vmem:[#allocation6 + $0x70] sm:$0xff]
          %v332 = vld [vmem:[#allocation6 + $0x78] sm:$0xff]
          %v333 = vld [vmem:[#allocation6 + $0x80] sm:$0xff]
          %v334 = vld [vmem:[#allocation6 + $0x88] sm:$0xff]
          %v335 = vld [vmem:[#allocation6 + $0x90] sm:$0xff]
          %v336 = vld [vmem:[#allocation6 + $0x98] sm:$0xff]
          %v337 = vld [vmem:[#allocation6 + $0xa0] sm:$0xff]
          %v338 = vld [vmem:[#allocation6 + $0xa8] sm:$0xff]
          %v339 = vld [vmem:[#allocation6 + $0xb0] sm:$0xff]
          %v340 = vld [vmem:[#allocation6 + $0xb8] sm:$0xff]
          %v341 = vld [vmem:[#allocation6 + $0xc0] sm:$0xff]
          %v342 = vld [vmem:[#allocation6 + $0xc8] sm:$0xff]
          %v343 = vld [vmem:[#allocation6 + $0xd0] sm:$0xff]
          %v344 = vld [vmem:[#allocation6 + $0xd8] sm:$0xff]
          %v345 = vld [vmem:[#allocation6 + $0xe0] sm:$0xff]
          %v346 = vld [vmem:[#allocation6 + $0xe8] sm:$0xff]
          %v347 = vld [vmem:[#allocation6 + $0xf0] sm:$0xff]
          %v348 = vld [vmem:[#allocation6 + $0xf8] sm:$0xff]
          %v349 = vld [vmem:[%s2] sm:$0x3]
          %v351 = vlaneseq
          %v352 = vshrl.u32 %v351, 7
          %v353 = vsub.s32 0, %v352
          %v354 = vrot.slane %v349, %v353
          %v355 = vlaneseq
          %v356 = vshrl.u32 %v355, 7
          %v357 = vsub.s32 1, %v356
          %v358 = vrot.slane %v349, %v357
          %361 = vmatprep.subr.mxu0 %v318
          %362 = vmatpush1.msra.mxu0 %v317
          %363 = vmatprep.subr.mxu0 %v320
          %364 = vmatpush1.msra.mxu0 %v319
          %365 = vmatprep.subr.mxu0 %v322
          %366 = vmatpush1.msra.mxu0 %v321
          %367 = vmatprep.subr.mxu0 %v324
          %368 = vmatpush1.msra.mxu0 %v323
          %369 = vmatprep.subr.mxu0 %v326
          %370 = vmatpush1.msra.mxu0 %v325
          %371 = vmatprep.subr.mxu0 %v328
          %372 = vmatpush1.msra.mxu0 %v327
          %373 = vmatprep.subr.mxu0 %v330
          %374 = vmatpush1.msra.mxu0 %v329
          %375 = vmatprep.subr.mxu0 %v332
          %376 = vmatpush1.msra.mxu0 %v331
          %377 = vmatprep.subr.mxu0 %v334
          %378 = vmatpush1.msra.mxu0 %v333
          %379 = vmatprep.subr.mxu0 %v336
          %380 = vmatpush1.msra.mxu0 %v335
          %381 = vmatprep.subr.mxu0 %v338
          %382 = vmatpush1.msra.mxu0 %v337
          %383 = vmatprep.subr.mxu0 %v340
          %384 = vmatpush1.msra.mxu0 %v339
          %385 = vmatprep.subr.mxu0 %v342
          %386 = vmatpush1.msra.mxu0 %v341
          %387 = vmatprep.subr.mxu0 %v344
          %388 = vmatpush1.msra.mxu0 %v343
          %389 = vmatprep.subr.mxu0 %v346
          %390 = vmatpush1.msra.mxu0 %v345
          %391 = vmatprep.subr.mxu0 %v348
          %392 = vmatpush1.msra.mxu0 %v347
          %393 = vmatprep.subr.mxu0 0.0
          %394 = vmatpush1.msra.mxu0 0.0
          %395 = vmatprep.subr.mxu0 0.0
          %396 = vmatpush1.msra.mxu0 0.0
          %397 = vmatprep.subr.mxu0 0.0
          %398 = vmatpush1.msra.mxu0 0.0
          %399 = vmatprep.subr.mxu0 0.0
          %400 = vmatpush1.msra.mxu0 0.0
          %401 = vmatprep.subr.mxu0 0.0
          %402 = vmatpush1.msra.mxu0 0.0
          %403 = vmatprep.subr.mxu0 0.0
          %404 = vmatpush1.msra.mxu0 0.0
          %405 = vmatprep.subr.mxu0 0.0
          %406 = vmatpush1.msra.mxu0 0.0
          %407 = vmatprep.subr.mxu0 0.0
          %408 = vmatpush1.msra.mxu0 0.0
          %409 = vmatprep.subr.mxu0 0.0
          %410 = vmatpush1.msra.mxu0 0.0
          %411 = vmatprep.subr.mxu0 0.0
          %412 = vmatpush1.msra.mxu0 0.0
          %413 = vmatprep.subr.mxu0 0.0
          %414 = vmatpush1.msra.mxu0 0.0
          %415 = vmatprep.subr.mxu0 0.0
          %416 = vmatpush1.msra.mxu0 0.0
          %417 = vmatprep.subr.mxu0 0.0
          %418 = vmatpush1.msra.mxu0 0.0
          %419 = vmatprep.subr.mxu0 0.0
          %420 = vmatpush1.msra.mxu0 0.0
          %421 = vmatprep.subr.mxu0 0.0
          %422 = vmatpush1.msra.mxu0 0.0
          %423 = vmatprep.subr.mxu0 0.0
          %424 = vmatpush1.msra.mxu0 0.0
          %425 = vmatprep.mubr.f32.mxu0 0.0
          %426 = vmatmul.mubr.f32.gmra.mrb[0].mxu0 %v313
          %v427 = vpop.f32.mrb[0].mxu0
          %v428 = vadd.f32 %v354, %v427
          %v429 = vpop.f32.mrb[0].mxu0
          %v430 = vadd.f32 %v358, %v429
          %431 = vmatprep.mubr.f32.mxu0 0.0
          %432 = vmatmul.mubr.f32.gmra.mrb[0].mxu0 %v314
          %v433 = vpop.f32.mrb[0].mxu0
          %v434 = vadd.f32 %v354, %v433
          %v435 = vpop.f32.mrb[0].mxu0
          %v436 = vadd.f32 %v358, %v435
          %437 = vmatprep.mubr.f32.mxu0 0.0
          %438 = vmatmul.mubr.f32.gmra.mrb[0].mxu0 %v315
          %v439 = vpop.f32.mrb[0].mxu0
          %v440 = vadd.f32 %v354, %v439
          %v441 = vpop.f32.mrb[0].mxu0
          %v442 = vadd.f32 %v358, %v441
          %443 = vmatprep.mubr.f32.mxu0 0.0
          %444 = vmatmul.mubr.f32.gmra.mrb[0].mxu0 %v316
          %v445 = vpop.f32.mrb[0].mxu0
          %v446 = vadd.f32 %v354, %v445
          %v447 = vpop.f32.mrb[0].mxu0
          %v448 = vadd.f32 %v358, %v447
          %449 = vdwg.mxu0
          %v450 = vmax.f32 %v428, 0.0
          %v451 = vmax.f32 %v430, 0.0
          %v452 = vmax.f32 %v434, 0.0
          %v453 = vmax.f32 %v436, 0.0
          %v454 = vmax.f32 %v440, 0.0
          %v455 = vmax.f32 %v442, 0.0
          %v456 = vmax.f32 %v446, 0.0
          %v457 = vmax.f32 %v448, 0.0
          %458 = vst [vmem:[#allocation2] sm:$0xff] %v450
          %459 = vst [vmem:[#allocation2 + $0x8] sm:$0xff] %v451
          %460 = vst [vmem:[#allocation2 + $0x10] sm:$0xff] %v452
          %461 = vst [vmem:[#allocation2 + $0x18] sm:$0xff] %v453
          %462 = vst [vmem:[#allocation2 + $0x20] sm:$0xff] %v454
          %463 = vst [vmem:[#allocation2 + $0x28] sm:$0xff] %v455
          %464 = vst [vmem:[#allocation2 + $0x30] sm:$0xff] %v456
          %465 = vst [vmem:[#allocation2 + $0x38] sm:$0xff] %v457
        $region56: #{mlp_forward.1} parent=39 // pred_fallthru
          _
        %v466 = vld [vmem:[#allocation2] sm:$0xff]
        %v467 = vld [vmem:[#allocation2 + $0x8] sm:$0xff]
        %v468 = vld [vmem:[#allocation2 + $0x10] sm:$0xff]
        %v469 = vld [vmem:[#allocation2 + $0x18] sm:$0xff]
        %v470 = vld [vmem:[#allocation2 + $0x20] sm:$0xff]
        %v471 = vld [vmem:[#allocation2 + $0x28] sm:$0xff]
        %v472 = vld [vmem:[#allocation2 + $0x30] sm:$0xff]
        %v473 = vld [vmem:[#allocation2 + $0x38] sm:$0xff]
        %v474 = vld [vmem:[#allocation8] sm:$0xff]
        %v475 = vld [vmem:[#allocation8 + $0x8] sm:$0xff]
        %v476 = vld [vmem:[#allocation8 + $0x10] sm:$0xff]
        %v477 = vld [vmem:[#allocation8 + $0x18] sm:$0xff]
        %v478 = vld [vmem:[#allocation8 + $0x20] sm:$0xff]
        %v479 = vld [vmem:[#allocation8 + $0x28] sm:$0xff]
        %v480 = vld [vmem:[#allocation8 + $0x30] sm:$0xff]
        %v481 = vld [vmem:[#allocation8 + $0x38] sm:$0xff]
        %v482 = vld [vmem:[#allocation8 + $0x40] sm:$0xff]
        %v483 = vld [vmem:[#allocation8 + $0x48] sm:$0xff]
        %v484 = vld [vmem:[#allocation8 + $0x50] sm:$0xff]
        %v485 = vld [vmem:[#allocation8 + $0x58] sm:$0xff]
        %v486 = vld [vmem:[#allocation8 + $0x60] sm:$0xff]
        %v487 = vld [vmem:[#allocation8 + $0x68] sm:$0xff]
        %v488 = vld [vmem:[#allocation8 + $0x70] sm:$0xff]
        %v489 = vld [vmem:[#allocation8 + $0x78] sm:$0xff]
        %v490 = vld [vmem:[#allocation8 + $0x80] sm:$0xff]
        %v491 = vld [vmem:[#allocation8 + $0x88] sm:$0xff]
        %v492 = vld [vmem:[#allocation8 + $0x90] sm:$0xff]
        %v493 = vld [vmem:[#allocation8 + $0x98] sm:$0xff]
        %v494 = vld [vmem:[#allocation8 + $0xa0] sm:$0xff]
        %v495 = vld [vmem:[#allocation8 + $0xa8] sm:$0xff]
        %v496 = vld [vmem:[#allocation8 + $0xb0] sm:$0xff]
        %v497 = vld [vmem:[#allocation8 + $0xb8] sm:$0xff]
        %v498 = vld [vmem:[#allocation8 + $0xc0] sm:$0xff]
        %v499 = vld [vmem:[#allocation8 + $0xc8] sm:$0xff]
        %v500 = vld [vmem:[#allocation8 + $0xd0] sm:$0xff]
        %v501 = vld [vmem:[#allocation8 + $0xd8] sm:$0xff]
        %v502 = vld [vmem:[#allocation8 + $0xe0] sm:$0xff]
        %v503 = vld [vmem:[#allocation8 + $0xe8] sm:$0xff]
        %v504 = vld [vmem:[#allocation8 + $0xf0] sm:$0xff]
        %v505 = vld [vmem:[#allocation8 + $0xf8] sm:$0xff]
        %v506 = vld [vmem:[%s307] sm:$0x1]
        %v508 = vlaneseq
        %v509 = vshrl.u32 %v508, 7
        %v510 = vsub.s32 0, %v509
        %v511 = vrot.slane %v506, %v510
        %513 = vmatprep.subr.mxu0 0.0
        %514 = vmatpush1.msra.mxu0 %v474
        %515 = vmatprep.subr.mxu0 0.0
        %516 = vmatpush1.msra.mxu0 %v475
        %517 = vmatprep.subr.mxu0 0.0
        %518 = vmatpush1.msra.mxu0 %v476
        %519 = vmatprep.subr.mxu0 0.0
        %520 = vmatpush1.msra.mxu0 %v477
        %521 = vmatprep.subr.mxu0 0.0
        %522 = vmatpush1.msra.mxu0 %v478
        %523 = vmatprep.subr.mxu0 0.0
        %524 = vmatpush1.msra.mxu0 %v479
        %525 = vmatprep.subr.mxu0 0.0
        %526 = vmatpush1.msra.mxu0 %v480
        %527 = vmatprep.subr.mxu0 0.0
        %528 = vmatpush1.msra.mxu0 %v481
        %529 = vmatprep.subr.mxu0 0.0
        %530 = vmatpush1.msra.mxu0 %v482
        %531 = vmatprep.subr.mxu0 0.0
        %532 = vmatpush1.msra.mxu0 %v483
        %533 = vmatprep.subr.mxu0 0.0
        %534 = vmatpush1.msra.mxu0 %v484
        %535 = vmatprep.subr.mxu0 0.0
        %536 = vmatpush1.msra.mxu0 %v485
        %537 = vmatprep.subr.mxu0 0.0
        %538 = vmatpush1.msra.mxu0 %v486
        %539 = vmatprep.subr.mxu0 0.0
        %540 = vmatpush1.msra.mxu0 %v487
        %541 = vmatprep.subr.mxu0 0.0
        %542 = vmatpush1.msra.mxu0 %v488
        %543 = vmatprep.subr.mxu0 0.0
        %544 = vmatpush1.msra.mxu0 %v489
        %545 = vmatprep.subr.mxu0 0.0
        %546 = vmatpush1.msra.mxu0 %v490
        %547 = vmatprep.subr.mxu0 0.0
        %548 = vmatpush1.msra.mxu0 %v491
        %549 = vmatprep.subr.mxu0 0.0
        %550 = vmatpush1.msra.mxu0 %v492
        %551 = vmatprep.subr.mxu0 0.0
        %552 = vmatpush1.msra.mxu0 %v493
        %553 = vmatprep.subr.mxu0 0.0
        %554 = vmatpush1.msra.mxu0 %v494
        %555 = vmatprep.subr.mxu0 0.0
        %556 = vmatpush1.msra.mxu0 %v495
        %557 = vmatprep.subr.mxu0 0.0
        %558 = vmatpush1.msra.mxu0 %v496
        %559 = vmatprep.subr.mxu0 0.0
        %560 = vmatpush1.msra.mxu0 %v497
        %561 = vmatprep.subr.mxu0 0.0
        %562 = vmatpush1.msra.mxu0 %v498
        %563 = vmatprep.subr.mxu0 0.0
        %564 = vmatpush1.msra.mxu0 %v499
        %565 = vmatprep.subr.mxu0 0.0
        %566 = vmatpush1.msra.mxu0 %v500
        %567 = vmatprep.subr.mxu0 0.0
        %568 = vmatpush1.msra.mxu0 %v501
        %569 = vmatprep.subr.mxu0 0.0
        %570 = vmatpush1.msra.mxu0 %v502
        %571 = vmatprep.subr.mxu0 0.0
        %572 = vmatpush1.msra.mxu0 %v503
        %573 = vmatprep.subr.mxu0 0.0
        %574 = vmatpush1.msra.mxu0 %v504
        %575 = vmatprep.subr.mxu0 0.0
        %576 = vmatpush1.msra.mxu0 %v505
        %577 = vmatprep.mubr.f32.mxu0 %v467
        %578 = vmatmul.mubr.f32.gmra.mrb[0].mxu0 %v466
        %v579 = vpop.f32.mrb[0].mxu0
        %v580 = vadd.f32 %v511, %v579
        %v581 = vpop.f32.mrb[0].mxu0
        %582 = vmatprep.mubr.f32.mxu0 %v469
        %583 = vmatmul.mubr.f32.gmra.mrb[0].mxu0 %v468
        %v584 = vpop.f32.mrb[0].mxu0
        %v585 = vadd.f32 %v511, %v584
        %v586 = vpop.f32.mrb[0].mxu0
        %587 = vmatprep.mubr.f32.mxu0 %v471
        %588 = vmatmul.mubr.f32.gmra.mrb[0].mxu0 %v470
        %v589 = vpop.f32.mrb[0].mxu0
        %v590 = vadd.f32 %v511, %v589
        %v591 = vpop.f32.mrb[0].mxu0
        %592 = vmatprep.mubr.f32.mxu0 %v473
        %593 = vmatmul.mubr.f32.gmra.mrb[0].mxu0 %v472
        %v594 = vpop.f32.mrb[0].mxu0
        %v595 = vadd.f32 %v511, %v594
        %v596 = vpop.f32.mrb[0].mxu0
        %597 = vdwg.mxu0
        %598 = vst [vmem:[%s303] sm:$0xff] %v580
        %599 = vst [vmem:[%s303 + $0x8] sm:$0xff] %v585
        %600 = vst [vmem:[%s303 + $0x10] sm:$0xff] %v590
        %601 = vst [vmem:[%s303 + $0x18] sm:$0xff] %v595
        %s602 = sand.u32 %s165, 1
        %s603 = scalar_lea.sflag [#allocation5], %s602
        %s604 = sand.u32 %s165, 1
        %s605 = smul.addr %s604, 32
        %s606 = scalar_lea.vmem [#allocation9], %s605
        // Predicated region
        $region57: #{mlp_forward.1} parent=39 // pred_check
          %p607 = pneg %p175
        $region58: #{mlp_forward.1} parent=39 // pred_check_branch
          %609 = sbr.rel (%p607) target = $region60
        $region59: #{mlp_forward.1} parent=39 // pred_region
          %s610 = smul.u32 4, %s27
          %s612 = ssub.s32 512, 512
          %613 = vsyncadd %s603, %s612
          %s614 = sadd.s32 %s28, %s610
          %s615 = smul.addr %s614, 128
          %s616 = scalar_lea.hbm %s5, %s615
          %s617 = sshll.u32 %s606, 4
          %s618 = int_to_ptr.vmem [resolvable:$true] %s617
          %623 = dma.vmem_to_hbm [thread:$0]  %s618, 512, %s616, %s603, 128, 128, 8
        $region60: #{mlp_forward.1} parent=39 // pred_fallthru
          _
      $region40: #{mlp_forward.1} parent=5 // pred_fallthru
        _
      %p624 = scmp.le.s32.totalorder 2, %s18
      // Predicated region
      $region61: #{mlp_forward.1} parent=5 // pred_check
        %p625 = pneg %p624
      $region62: #{mlp_forward.1} parent=5 // pred_check_branch
        %627 = sbr.rel (%p625) target = $region64
      $region63: #{mlp_forward.1} parent=5 // pred_region
        %s628 = ssub.s32 %s18, 2
        // Predicated region
        $region65: #{mlp_forward.1} parent=63 // pred_check
          %p629 = pneg %p181
        $region66: #{mlp_forward.1} parent=63 // pred_check_branch
          %631 = sbr.rel (%p629) target = $region68
        $region67: #{mlp_forward.1} parent=63 // pred_region
          %s632 = sand.u32 %s166, 1
          %s633 = scalar_lea.sflag [#allocation5], %s632
          %s634 = sand.u32 %s166, 1
          %s635 = smul.addr %s634, 32
          %s636 = scalar_lea.vmem [#allocation9], %s635
          %637 = dma.done %s633, 512
        $region68: #{mlp_forward.1} parent=63 // pred_fallthru
          _
      $region64: #{mlp_forward.1} parent=5 // pred_fallthru
        _
    $region6: #{mlp_forward.1} parent=1 // loop_footer
      %s22 = sadd.s32 1, %s18
    $region7: #{mlp_forward.1} parent=1 // loop_footer_branch
      %17 = sbr.rel target = $region3
    $region8: #{mlp_forward.1} parent=1 // loop_exit
      _
    %638 = vsyncpa [#allocation4], 1
    %s639 = scalar_lea.sflag [#allocation4], 1
    %640 = vsyncpa %s639, 1
    %641 = vsyncpa [#allocation7], 1
    %642 = vsyncpa [#allocation5], 1
    %s643 = scalar_lea.sflag [#allocation5], 1
    %644 = vsyncpa %s643, 1

</llo_original>
